<compile_context>
chip_gen: v6e
topology: v6e:2x2x1
jax: 0.10.0
libtpu: 0.0.40
codegen_flags: <defaults>
</compile_context>

<pallas_src>
import functools

import jax
import jax.numpy as jnp
from jax.experimental import pallas as pl
from jax.experimental.pallas import tpu as pltpu

EPS = 1e-5
LANE = 128
SUBLANE = 8


# --------------------------------------------------------------------------
# Small helpers
# --------------------------------------------------------------------------
def _vmem_capacity_bytes():
    try:
        info = pltpu.get_tpu_info()
        cap = getattr(info, "vmem_capacity_bytes", None)
        if cap:
            return int(cap)
    except Exception:
        pass
    return 64 * 1024 * 1024  # conservative fallback (v7x per-core VMEM)


def _pad_row(row, f_pad, pad_value):
    """Reshape a per-feature vector to (1, F) f32 and pad to f_pad lanes."""
    row = row.reshape(1, -1).astype(jnp.float32)
    f = row.shape[1]
    if f == f_pad:
        return row
    return jnp.pad(row, ((0, 0), (0, f_pad - f)), constant_values=pad_value)


def _steps_cap(f_blocks):
    # Cap the feature tile so the feature grid has >= ~4 steps when possible.
    return max(LANE, (f_blocks // 4) * LANE)


# --------------------------------------------------------------------------
# Kernels
# --------------------------------------------------------------------------
def _bn_filtered_train_kernel(x_ref, gamma_ref, beta_ref, rmean_ref, rvar_ref,
                              bn_ref, new_mean_ref, new_var_ref,
                              *, thres, alpha, n):
    """Fused training kernel: whole batch column (N, tile_f) resident in VMEM."""
    x = x_ref[...].astype(jnp.float32)                      # (N, tile_f)

    inv_n = 1.0 / n
    inv_nm1 = 1.0 / (n - 1) if n > 1 else float("nan")
    mean = jnp.sum(x, axis=0, keepdims=True) * inv_n        # (1, tile_f)
    xm = x - mean
    var = jnp.sum(xm * xm, axis=0, keepdims=True) * inv_nm1  # unbiased

    # Divide-free outlier test: |x - mean| < thres * sqrt(var + eps).
    thr = thres * jnp.sqrt(var + EPS)
    sel = jnp.abs(xm) < thr
    xm_sel = jnp.where(sel, xm, 0.0)

    # Shifted filtered sums (single centering pass).
    s0 = jnp.sum(sel.astype(jnp.float32), axis=0, keepdims=True)
    s1 = jnp.sum(xm_sel, axis=0, keepdims=True)
    s2 = jnp.sum(xm_sel * xm_sel, axis=0, keepdims=True)

    fmean = mean + s1 / s0                        # s0 == 0 -> NaN (matches ref)
    fvar = (s2 - s1 * s1 / s0) / (s0 - 1.0)       # s0 == 1 -> Inf (matches ref)

    # Affine normalize folded into one per-element FMA.
    inv_std = jax.lax.rsqrt(fvar + EPS)
    scale = gamma_ref[...] * inv_std
    shift = beta_ref[...] - fmean * scale
    bn_ref[...] = (x * scale + shift).astype(bn_ref.dtype)

    # EMA running-stat update (returned, not mutated in place).
    new_mean_ref[...] = alpha * rmean_ref[...] + (1.0 - alpha) * fmean
    new_var_ref[...] = alpha * rvar_ref[...] + (1.0 - alpha) * fvar


def _affine_normalize_kernel(x_ref, gamma_ref, beta_ref, mean_ref, var_ref,
                             bn_ref):
    """Elementwise bn = gamma * (x - mean) / sqrt(var + eps) + beta."""
    inv_std = jax.lax.rsqrt(var_ref[...] + EPS)
    scale = gamma_ref[...] * inv_std
    shift = beta_ref[...] - mean_ref[...] * scale
    bn_ref[...] = (x_ref[...].astype(jnp.float32) * scale + shift
                   ).astype(bn_ref.dtype)


def _col_sums_kernel(x_ref, s_ref, ss_ref, *, n_total, tile_n, need_mask):
    """Chunked pass 1: per-feature sum(x) and sum(x^2) over the batch."""
    j = pl.program_id(1)

    @pl.when(j == 0)
    def _():
        s_ref[...] = jnp.zeros_like(s_ref)
        ss_ref[...] = jnp.zeros_like(ss_ref)

    x = x_ref[...].astype(jnp.float32)
    if need_mask:
        row = jax.lax.broadcasted_iota(jnp.int32, x.shape, 0) + j * tile_n
        x = jnp.where(row < n_total, x, 0.0)
    s_ref[...] += jnp.sum(x, axis=0, keepdims=True)
    ss_ref[...] += jnp.sum(x * x, axis=0, keepdims=True)


def _filtered_sums_kernel(x_ref, mean_ref, thr_ref, s0_ref, s1_ref, s2_ref,
                          *, n_total, tile_n, need_mask):
    """Chunked pass 2: filtered sums shifted around the batch mean."""
    j = pl.program_id(1)

    @pl.when(j == 0)
    def _():
        s0_ref[...] = jnp.zeros_like(s0_ref)
        s1_ref[...] = jnp.zeros_like(s1_ref)
        s2_ref[...] = jnp.zeros_like(s2_ref)

    x = x_ref[...].astype(jnp.float32)
    xm = x - mean_ref[...]
    sel = jnp.abs(xm) < thr_ref[...]
    if need_mask:
        row = jax.lax.broadcasted_iota(jnp.int32, x.shape, 0) + j * tile_n
        sel = sel & (row < n_total)
    xm_sel = jnp.where(sel, xm, 0.0)
    s0_ref[...] += jnp.sum(sel.astype(jnp.float32), axis=0, keepdims=True)
    s1_ref[...] += jnp.sum(xm_sel, axis=0, keepdims=True)
    s2_ref[...] += jnp.sum(xm_sel * xm_sel, axis=0, keepdims=True)


# --------------------------------------------------------------------------
# pallas_call wrappers
# --------------------------------------------------------------------------
def _normalize_call(x, gamma_r, beta_r, mean_r, var_r, *, vmem_limit):
    """2-D (N-chunk x F-tile) elementwise normalize (eval mode / final pass)."""
    N, F = x.shape
    f_blocks = pl.cdiv(F, LANE)
    f_cover = f_blocks * LANE

    tile_n = N if N <= 256 else 256
    n_tiles = pl.cdiv(N, tile_n)
    tile_f = min(512, f_cover)
    if n_tiles < 4:
        tile_f = min(tile_f, _steps_cap(f_blocks))
    tile_f = max(LANE, (tile_f // LANE) * LANE)
    f_tiles = pl.cdiv(F, tile_f)
    f_pad = f_tiles * tile_f

    gamma_r = _pad_row(gamma_r, f_pad, 1.0)
    beta_r = _pad_row(beta_r, f_pad, 0.0)
    mean_r = _pad_row(mean_r, f_pad, 0.0)
    var_r = _pad_row(var_r, f_pad, 1.0)

    x_spec = pl.BlockSpec((tile_n, tile_f), lambda i, j: (i, j))
    row_spec = pl.BlockSpec((1, tile_f), lambda i, j: (0, j))
    return pl.pallas_call(
        _affine_normalize_kernel,
        grid=(n_tiles, f_tiles),
        in_specs=[x_spec, row_spec, row_spec, row_spec, row_spec],
        out_specs=x_spec,
        out_shape=jax.ShapeDtypeStruct((N, F), x.dtype),
        compiler_params=pltpu.CompilerParams(
            dimension_semantics=("parallel", "parallel"),
            vmem_limit_bytes=vmem_limit),
    )(x, gamma_r, beta_r, mean_r, var_r)


def _train_chunked(x, gamma, beta, running_mean, running_var, *,
                   thres, alpha, vmem_limit, chunk_tile_n=None):
    """Large-N training path: 3 passes over x with N-chunked accumulators."""
    N, F = x.shape
    f_blocks = pl.cdiv(F, LANE)
    f_cover = f_blocks * LANE

    xb = x.dtype.itemsize
    tile_f = max(LANE, min(512, _steps_cap(f_blocks), f_cover))
    if chunk_tile_n is None:
        per_elem = 2 * xb + 3 * 4        # double-buffered x in + f32 temporaries
        tile_n = (vmem_limit * 3 // 4) // (per_elem * tile_f)
        tile_n = min(max(SUBLANE, (tile_n // SUBLANE) * SUBLANE), 1024)
    else:
        tile_n = int(chunk_tile_n)
    if tile_n >= N:
        tile_n = N
    else:
        tile_n = max(SUBLANE, (tile_n // SUBLANE) * SUBLANE)
    n_chunks = pl.cdiv(N, tile_n)
    need_mask = (N % tile_n) != 0
    f_tiles = pl.cdiv(F, tile_f)
    f_pad = f_tiles * tile_f

    x_spec = pl.BlockSpec((tile_n, tile_f), lambda i, j: (j, i))
    row_spec = pl.BlockSpec((1, tile_f), lambda i, j: (0, i))
    acc_spec = pl.BlockSpec((1, tile_f), lambda i, j: (0, i))
    cparams = pltpu.CompilerParams(
        dimension_semantics=("parallel", "arbitrary"),
        vmem_limit_bytes=vmem_limit)

    # Pass 1: per-feature batch sums.
    sx, sxx = pl.pallas_call(
        functools.partial(_col_sums_kernel, n_total=N, tile_n=tile_n,
                          need_mask=need_mask),
        grid=(f_tiles, n_chunks),
        in_specs=[x_spec],
        out_specs=(acc_spec, acc_spec),
        out_shape=(jax.ShapeDtypeStruct((1, F), jnp.float32),
                   jax.ShapeDtypeStruct((1, F), jnp.float32)),
        compiler_params=cparams,
    )(x)

    n_f = jnp.float32(N)
    mean = sx / n_f
    var = (sxx - sx * mean) / (n_f - 1.0)            # unbiased batch variance
    thr = float(thres) * jnp.sqrt(var + EPS)

    # Pass 2: filtered sums (shifted around the batch mean).
    s0, s1, s2 = pl.pallas_call(
        functools.partial(_filtered_sums_kernel, n_total=N, tile_n=tile_n,
                          need_mask=need_mask),
        grid=(f_tiles, n_chunks),
        in_specs=[x_spec, row_spec, row_spec],
        out_specs=(acc_spec, acc_spec, acc_spec),
        out_shape=(jax.ShapeDtypeStruct((1, F), jnp.float32),) * 3,
        compiler_params=cparams,
    )(x, _pad_row(mean, f_pad, 0.0), _pad_row(thr, f_pad, 1.0))

    fmean = mean + s1 / s0
    fvar = (s2 - s1 * s1 / s0) / (s0 - 1.0)

    # Pass 3: elementwise affine normalize (reuses the eval kernel).
    bn = _normalize_call(x, gamma, beta, fmean, fvar, vmem_limit=vmem_limit)

    new_mean = (alpha * running_mean.astype(jnp.float32)
                + (1.0 - alpha) * fmean[0]).astype(running_mean.dtype)
    new_var = (alpha * running_var.astype(jnp.float32)
               + (1.0 - alpha) * fvar[0]).astype(running_var.dtype)
    return bn, new_mean, new_var


def bn1d_filtered_moments(x, gamma, beta, running_mean, running_var, *,
                          thres=1.0, alpha=0.9, training=True,
                          force_chunked=False, chunk_tile_n=None):
    """Forward pass of BN1dFitleredMoments.

    Returns (bn, new_running_mean, new_running_var) in training mode,
    (bn, running_mean, running_var) unchanged in eval mode.
    """
    N, F = x.shape
    vmem_limit = _vmem_capacity_bytes() // 2      # scoped-VMEM budget per call

    if not training:
        bn = _normalize_call(x, gamma, beta, running_mean, running_var,
                             vmem_limit=vmem_limit)
        return bn, running_mean, running_var

    f_blocks = pl.cdiv(F, LANE)
    f_cover = f_blocks * LANE

    # Column-resident fused kernel VMEM estimate: double-buffered x in + bn out
    # plus ~5 live (N, tile_f) f32 temporaries inside the kernel body.
    xb = x.dtype.itemsize
    per_elem = 2 * xb + 2 * xb + 5 * 4
    tile_f_fit = (vmem_limit * 3 // 4) // (per_elem * N)
    tile_f_fit = (tile_f_fit // LANE) * LANE

    if force_chunked or tile_f_fit < LANE:
        return _train_chunked(x, gamma, beta, running_mean, running_var,
                              thres=thres, alpha=alpha,
                              vmem_limit=vmem_limit, chunk_tile_n=chunk_tile_n)

    tile_f = max(LANE, min(tile_f_fit, _steps_cap(f_blocks), f_cover))
    num_tiles = pl.cdiv(F, tile_f)
    f_pad = num_tiles * tile_f

    gamma_r = _pad_row(gamma, f_pad, 1.0)
    beta_r = _pad_row(beta, f_pad, 0.0)
    rmean_r = _pad_row(running_mean, f_pad, 0.0)
    rvar_r = _pad_row(running_var, f_pad, 1.0)

    x_spec = pl.BlockSpec((N, tile_f), lambda i: (0, i))
    row_spec = pl.BlockSpec((1, tile_f), lambda i: (0, i))

    bn, new_mean, new_var = pl.pallas_call(
        functools.partial(_bn_filtered_train_kernel,
                          thres=float(thres), alpha=float(alpha), n=N),
        grid=(num_tiles,),
        in_specs=[x_spec, row_spec, row_spec, row_spec, row_spec],
        out_specs=(x_spec, row_spec, row_spec),
        out_shape=(jax.ShapeDtypeStruct((N, F), x.dtype),
                   jax.ShapeDtypeStruct((1, F), jnp.float32),
                   jax.ShapeDtypeStruct((1, F), jnp.float32)),
        compiler_params=pltpu.CompilerParams(
            dimension_semantics=("parallel",),
            vmem_limit_bytes=vmem_limit),
    )(x, gamma_r, beta_r, rmean_r, rvar_r)

    return (bn,
            new_mean[0].astype(running_mean.dtype),
            new_var[0].astype(running_var.dtype))


# --------------------------------------------------------------------------
# Pure-JAX references (mirror the PyTorch module)
# --------------------------------------------------------------------------
def _reference_train(x, gamma, beta, rmean, rvar, thres=1.0, alpha=0.9):
    x = x.astype(jnp.float32)
    n = x.shape[0]
    mean = jnp.mean(x, axis=0)
    var = jnp.sum((x - mean) ** 2, axis=0) / (n - 1)
    normalized = (x - mean) / jnp.sqrt(var + EPS)
    sel = ((normalized < thres) & (normalized > -thres)).astype(jnp.float32)
    cnt = jnp.sum(sel, axis=0)
    fmean = jnp.sum(x * sel, axis=0) / cnt
    diff = (x - fmean) * sel
    fvar = jnp.sum(diff * diff, axis=0) / (cnt - 1.0)
    bn = gamma * (x - fmean) / jnp.sqrt(fvar + EPS) + beta
    new_mean = alpha * rmean + (1.0 - alpha) * fmean
    new_var = alpha * rvar + (1.0 - alpha) * fvar
    return bn, new_mean, new_var


def _reference_eval(x, gamma, beta, rmean, rvar):
    return gamma * (x - rmean) / jnp.sqrt(rvar + EPS) + beta


if __name__ == "__main__":
    NUM_FEATURES = 32
    BATCH = 16

    key = jax.random.PRNGKey(0)
    x = jax.random.normal(key, (BATCH, NUM_FEATURES), dtype=jnp.float32) * 2.0

    gamma = jnp.ones((NUM_FEATURES,), dtype=jnp.float32)
    beta = jnp.zeros((NUM_FEATURES,), dtype=jnp.float32)
    running_mean = jnp.zeros((NUM_FEATURES,), dtype=jnp.float32)
    running_var = jnp.ones((NUM_FEATURES,), dtype=jnp.float32)

    bn_r, mean_r, var_r = _reference_train(x, gamma, beta,
                                           running_mean, running_var)

    # Fused (column-resident) training path.
    bn, new_mean, new_var = bn1d_filtered_moments(
        x, gamma, beta, running_mean, running_var,
        thres=1.0, alpha=0.9, training=True)
    jax.block_until_ready((bn, new_mean, new_var))
    assert jnp.allclose(bn, bn_r, rtol=1e-3, atol=1e-4), "train bn mismatch"
    assert jnp.allclose(new_mean, mean_r, rtol=1e-3, atol=1e-4), "mean mismatch"
    assert jnp.allclose(new_var, var_r, rtol=1e-3, atol=1e-4), "var mismatch"

    # Large-N chunked training path (forced small chunks to exercise it here).
    bn_c, mean_c, var_c = bn1d_filtered_moments(
        x, gamma, beta, running_mean, running_var,
        thres=1.0, alpha=0.9, training=True,
        force_chunked=True, chunk_tile_n=8)
    jax.block_until_ready((bn_c, mean_c, var_c))
    assert jnp.allclose(bn_c, bn_r, rtol=1e-3, atol=1e-4), "chunked bn mismatch"
    assert jnp.allclose(mean_c, mean_r, rtol=1e-3, atol=1e-4), "chunked mean"
    assert jnp.allclose(var_c, var_r, rtol=1e-3, atol=1e-4), "chunked var"

    # Eval-mode forward (uses running stats).
    bn_eval, _, _ = bn1d_filtered_moments(
        x, gamma, beta, new_mean, new_var, training=False)
    jax.block_until_ready(bn_eval)
    bn_eval_r = _reference_eval(x, gamma, beta, new_mean, new_var)
    assert jnp.allclose(bn_eval, bn_eval_r, rtol=1e-3, atol=1e-4), \
        "eval bn mismatch"

    print("KERNEL_OK")
</pallas_src>

<mosaic_0001>
module attributes {stable_mosaic.version = 11 : i64} {
  func.func @_bn_filtered_train_kernel(%arg0: i32, %arg1: memref<16x128xf32, #tpu.memory_space<vmem>>, %arg2: memref<1x128xf32, #tpu.memory_space<vmem>>, %arg3: memref<1x128xf32, #tpu.memory_space<vmem>>, %arg4: memref<1x128xf32, #tpu.memory_space<vmem>>, %arg5: memref<1x128xf32, #tpu.memory_space<vmem>>, %arg6: memref<16x128xf32, #tpu.memory_space<vmem>>, %arg7: memref<1x128xf32, #tpu.memory_space<vmem>>, %arg8: memref<1x128xf32, #tpu.memory_space<vmem>>) attributes {dimension_semantics = [#tpu.dimension_semantics<parallel>], iteration_bounds = array<i64: 1>, scalar_prefetch = 0 : i64, scratch_operands = 0 : i64, tpu.core_type = #tpu.core_type<tc>, window_params = [{transform_indices = @transform_0, window_bounds = array<i64: 16, 128>}, {transform_indices = @transform_1, window_bounds = array<i64: 1, 128>}, {transform_indices = @transform_2, window_bounds = array<i64: 1, 128>}, {transform_indices = @transform_3, window_bounds = array<i64: 1, 128>}, {transform_indices = @transform_4, window_bounds = array<i64: 1, 128>}, {transform_indices = @transform_5, window_bounds = array<i64: 16, 128>}, {transform_indices = @transform_6, window_bounds = array<i64: 1, 128>}, {transform_indices = @transform_7, window_bounds = array<i64: 1, 128>}]} {
    %c0 = arith.constant 0 : index
    %c0_0 = arith.constant 0 : index
    %0 = vector.load %arg1[%c0, %c0_0] : memref<16x128xf32, #tpu.memory_space<vmem>>, vector<16x128xf32>
    %cst = arith.constant dense<0.000000e+00> : vector<128xf32>
    %1 = vector.multi_reduction <add>, %0, %cst [0] : vector<16x128xf32> to vector<128xf32>
    %2 = vector.shape_cast %1 : vector<128xf32> to vector<1x128xf32>
    %cst_1 = arith.constant 6.250000e-02 : f32
    %3 = vector.broadcast %cst_1 : f32 to vector<1x128xf32>
    %4 = arith.mulf %2, %3 : vector<1x128xf32>
    %5 = vector.broadcast %4 : vector<1x128xf32> to vector<16x128xf32>
    %6 = arith.subf %0, %5 : vector<16x128xf32>
    %7 = arith.mulf %6, %6 : vector<16x128xf32>
    %cst_2 = arith.constant dense<0.000000e+00> : vector<128xf32>
    %8 = vector.multi_reduction <add>, %7, %cst_2 [0] : vector<16x128xf32> to vector<128xf32>
    %9 = vector.shape_cast %8 : vector<128xf32> to vector<1x128xf32>
    %cst_3 = arith.constant 0.0666666701 : f32
    %10 = vector.broadcast %cst_3 : f32 to vector<1x128xf32>
    %11 = arith.mulf %9, %10 : vector<1x128xf32>
    %cst_4 = arith.constant 9.99999974E-6 : f32
    %12 = vector.broadcast %cst_4 : f32 to vector<1x128xf32>
    %13 = arith.addf %11, %12 : vector<1x128xf32>
    %14 = math.sqrt %13 : vector<1x128xf32>
    %cst_5 = arith.constant 1.000000e+00 : f32
    %15 = vector.broadcast %cst_5 : f32 to vector<1x128xf32>
    %16 = arith.mulf %15, %14 : vector<1x128xf32>
    %17 = math.absf %6 : vector<16x128xf32>
    %18 = vector.broadcast %16 : vector<1x128xf32> to vector<16x128xf32>
    %19 = arith.cmpf olt, %17, %18 : vector<16x128xf32>
    %cst_6 = arith.constant 0.000000e+00 : f32
    %20 = vector.broadcast %cst_6 : f32 to vector<16x128xf32>
    %21 = arith.select %19, %6, %20 : vector<16x128xi1>, vector<16x128xf32>
    %22 = arith.extui %19 : vector<16x128xi1> to vector<16x128xi32>
    %23 = arith.sitofp %22 : vector<16x128xi32> to vector<16x128xf32>
    %cst_7 = arith.constant dense<0.000000e+00> : vector<128xf32>
    %24 = vector.multi_reduction <add>, %23, %cst_7 [0] : vector<16x128xf32> to vector<128xf32>
    %25 = vector.shape_cast %24 : vector<128xf32> to vector<1x128xf32>
    %cst_8 = arith.constant dense<0.000000e+00> : vector<128xf32>
    %26 = vector.multi_reduction <add>, %21, %cst_8 [0] : vector<16x128xf32> to vector<128xf32>
    %27 = vector.shape_cast %26 : vector<128xf32> to vector<1x128xf32>
    %28 = arith.mulf %21, %21 : vector<16x128xf32>
    %cst_9 = arith.constant dense<0.000000e+00> : vector<128xf32>
    %29 = vector.multi_reduction <add>, %28, %cst_9 [0] : vector<16x128xf32> to vector<128xf32>
    %30 = vector.shape_cast %29 : vector<128xf32> to vector<1x128xf32>
    %31 = arith.divf %27, %25 : vector<1x128xf32>
    %32 = arith.addf %4, %31 : vector<1x128xf32>
    %33 = arith.mulf %27, %27 : vector<1x128xf32>
    %34 = arith.divf %33, %25 : vector<1x128xf32>
    %35 = arith.subf %30, %34 : vector<1x128xf32>
    %cst_10 = arith.constant 1.000000e+00 : f32
    %36 = vector.broadcast %cst_10 : f32 to vector<1x128xf32>
    %37 = arith.subf %25, %36 : vector<1x128xf32>
    %38 = arith.divf %35, %37 : vector<1x128xf32>
    %cst_11 = arith.constant 9.99999974E-6 : f32
    %39 = vector.broadcast %cst_11 : f32 to vector<1x128xf32>
    %40 = arith.addf %38, %39 : vector<1x128xf32>
    %41 = math.rsqrt %40 : vector<1x128xf32>
    %c0_12 = arith.constant 0 : index
    %c0_13 = arith.constant 0 : index
    %42 = vector.load %arg2[%c0_12, %c0_13] : memref<1x128xf32, #tpu.memory_space<vmem>>, vector<1x128xf32>
    %43 = arith.mulf %42, %41 : vector<1x128xf32>
    %c0_14 = arith.constant 0 : index
    %c0_15 = arith.constant 0 : index
    %44 = vector.load %arg3[%c0_14, %c0_15] : memref<1x128xf32, #tpu.memory_space<vmem>>, vector<1x128xf32>
    %45 = arith.mulf %32, %43 : vector<1x128xf32>
    %46 = arith.subf %44, %45 : vector<1x128xf32>
    %47 = vector.broadcast %43 : vector<1x128xf32> to vector<16x128xf32>
    %48 = arith.mulf %0, %47 : vector<16x128xf32>
    %49 = vector.broadcast %46 : vector<1x128xf32> to vector<16x128xf32>
    %50 = arith.addf %48, %49 : vector<16x128xf32>
    %c0_16 = arith.constant 0 : index
    %c0_17 = arith.constant 0 : index
    %51 = vector.load %arg6[%c0_16, %c0_17] : memref<16x128xf32, #tpu.memory_space<vmem>>, vector<16x128xf32>
    tpu.vector_store %arg6[%c0_16, %c0_17], %50 {strides = array<i32>} : memref<16x128xf32, #tpu.memory_space<vmem>>, vector<16x128xf32>,
    %c0_18 = arith.constant 0 : index
    %c0_19 = arith.constant 0 : index
    %52 = vector.load %arg4[%c0_18, %c0_19] : memref<1x128xf32, #tpu.memory_space<vmem>>, vector<1x128xf32>
    %cst_20 = arith.constant 0.899999976 : f32
    %53 = vector.broadcast %cst_20 : f32 to vector<1x128xf32>
    %54 = arith.mulf %53, %52 : vector<1x128xf32>
    %cst_21 = arith.constant 1.000000e-01 : f32
    %55 = vector.broadcast %cst_21 : f32 to vector<1x128xf32>
    %56 = arith.mulf %55, %32 : vector<1x128xf32>
    %57 = arith.addf %54, %56 : vector<1x128xf32>
    %c0_22 = arith.constant 0 : index
    %c0_23 = arith.constant 0 : index
    %58 = vector.load %arg7[%c0_22, %c0_23] : memref<1x128xf32, #tpu.memory_space<vmem>>, vector<1x128xf32>
    tpu.vector_store %arg7[%c0_22, %c0_23], %57 {strides = array<i32>} : memref<1x128xf32, #tpu.memory_space<vmem>>, vector<1x128xf32>,
    %c0_24 = arith.constant 0 : index
    %c0_25 = arith.constant 0 : index
    %59 = vector.load %arg5[%c0_24, %c0_25] : memref<1x128xf32, #tpu.memory_space<vmem>>, vector<1x128xf32>
    %cst_26 = arith.constant 0.899999976 : f32
    %60 = vector.broadcast %cst_26 : f32 to vector<1x128xf32>
    %61 = arith.mulf %60, %59 : vector<1x128xf32>
    %cst_27 = arith.constant 1.000000e-01 : f32
    %62 = vector.broadcast %cst_27 : f32 to vector<1x128xf32>
    %63 = arith.mulf %62, %38 : vector<1x128xf32>
    %64 = arith.addf %61, %63 : vector<1x128xf32>
    %c0_28 = arith.constant 0 : index
    %c0_29 = arith.constant 0 : index
    %65 = vector.load %arg8[%c0_28, %c0_29] : memref<1x128xf32, #tpu.memory_space<vmem>>, vector<1x128xf32>
    tpu.vector_store %arg8[%c0_28, %c0_29], %64 {strides = array<i32>} : memref<1x128xf32, #tpu.memory_space<vmem>>, vector<1x128xf32>,
    return
  }
  func.func @transform_0(%arg0: i32) -> (i32, i32) {
    %c0_i32 = arith.constant 0 : i32
    %c0_i32_0 = arith.constant 0 : i32
    return %c0_i32, %arg0 : i32, i32
  }
  func.func @transform_1(%arg0: i32) -> (i32, i32) {
    %c0_i32 = arith.constant 0 : i32
    %c0_i32_0 = arith.constant 0 : i32
    return %c0_i32, %arg0 : i32, i32
  }
  func.func @transform_2(%arg0: i32) -> (i32, i32) {
    %c0_i32 = arith.constant 0 : i32
    %c0_i32_0 = arith.constant 0 : i32
    return %c0_i32, %arg0 : i32, i32
  }
  func.func @transform_3(%arg0: i32) -> (i32, i32) {
    %c0_i32 = arith.constant 0 : i32
    %c0_i32_0 = arith.constant 0 : i32
    return %c0_i32, %arg0 : i32, i32
  }
  func.func @transform_4(%arg0: i32) -> (i32, i32) {
    %c0_i32 = arith.constant 0 : i32
    %c0_i32_0 = arith.constant 0 : i32
    return %c0_i32, %arg0 : i32, i32
  }
  func.func @transform_5(%arg0: i32) -> (i32, i32) {
    %c0_i32 = arith.constant 0 : i32
    %c0_i32_0 = arith.constant 0 : i32
    return %c0_i32, %arg0 : i32, i32
  }
  func.func @transform_6(%arg0: i32) -> (i32, i32) {
    %c0_i32 = arith.constant 0 : i32
    %c0_i32_0 = arith.constant 0 : i32
    return %c0_i32, %arg0 : i32, i32
  }
  func.func @transform_7(%arg0: i32) -> (i32, i32) {
    %c0_i32 = arith.constant 0 : i32
    %c0_i32_0 = arith.constant 0 : i32
    return %c0_i32, %arg0 : i32, i32
  }
}

</mosaic_0001>

<llo_original>
// kernel: tpu_custom_call.1
$region0: #{tpu_custom_call.1}
  #allocation0 [shape = 'u32[]', space=smem, size = 0x4, offset = 0x4, fixed_abs, tag = 'smem constant byte address 0x4 - core index']
  #allocation1 [shape = 'u32[144,128]{1,0:T(1,128)}', space=vmem, size = 0x12000, scoped, tag = 'internal scratch']
  %s0 = inlined_call_operand.hbm [shape: f32[16,32], index: 0, kind: input, shape index: {}]
  %s1 = inlined_call_operand.vmem [shape: f32[1,128], index: 1, kind: input, shape index: {}]
  %s2 = inlined_call_operand.vmem [shape: f32[1,128], index: 2, kind: input, shape index: {}]
  %s3 = inlined_call_operand.vmem [shape: f32[1,128], index: 3, kind: input, shape index: {}]
  %s4 = inlined_call_operand.vmem [shape: f32[1,128], index: 4, kind: input, shape index: {}]
  %s5 = inlined_call_operand.hbm [shape: f32[16,32], index: 5, kind: output, shape index: {0}]
  %s6 = inlined_call_operand.hbm [shape: f32[1,32], index: 6, kind: output, shape index: {1}]
  %s7 = inlined_call_operand.hbm [shape: f32[1,32], index: 7, kind: output, shape index: {2}]
  %8 = xla_tuple %s5, %s6, %s7
  %s9 = sld [smem:[#allocation0]]
  $region50: #{tpu_custom_call.1} parent=0
    _
  %s11 = ssub.s32 1, %s9
  %s12 = scalar_select 0, %s11, %s9
  $region1: #{tpu_custom_call.1} parent=0
    #allocation2 [shape = 'u8[8192]{0}', space=vmem, size = 0x2000, scoped, tag = 'input window, operand 0, single buffered']
    #allocation3 [shape = 's32[1]{0}', space=sflag, size = 0x4, scoped, tag = 'scoped memory for tpu_custom_call.1']
    #allocation4 [shape = 's32[1]{0}', space=sflag, size = 0x4, scoped, tag = 'scoped memory for tpu_custom_call.1']
    #allocation5 [shape = 'u8[8192]{0}', space=vmem, size = 0x2000, scoped, tag = 'output window, operand 0, single buffered']
    #allocation6 [shape = 'u8[512]{0}', space=vmem, size = 0x400, scoped, tag = 'output window, operand 1, single buffered']
    #allocation7 [shape = 's32[1]{0}', space=sflag, size = 0x4, scoped, tag = 'scoped memory for tpu_custom_call.1']
    #allocation8 [shape = 'u8[512]{0}', space=vmem, size = 0x400, scoped, tag = 'output window, operand 2, single buffered']
    %13 = vsyncpa [#allocation3], 0
    %14 = vsyncpa [#allocation4], 0
    %15 = vsyncpa [#allocation7], 0
    // Predicated region
    $region2: #{tpu_custom_call.1} parent=1 // pred_check
      _
    $region3: #{tpu_custom_call.1} parent=1 // pred_check_branch
      %17 = sbr.rel (0) target = $region5
    $region4: #{tpu_custom_call.1} parent=1 // pred_region
      %s19 = ssub.s32 256, 256
      %20 = vsyncadd [#allocation3], %s19
      %s21 = sshll.u32 [#allocation2], 4
      %s22 = int_to_ptr.vmem [resolvable:$true] %s21
      %27 = dma.hbm_to_vmem [thread:$0]  %s0, 256, %s22, [#allocation3], 128, 128, 8
    $region5: #{tpu_custom_call.1} parent=1 // pred_fallthru
      _
    // Predicated region
    $region6: #{tpu_custom_call.1} parent=1 // pred_check
      _
    $region7: #{tpu_custom_call.1} parent=1 // pred_check_branch
      %29 = sbr.rel (0) target = $region9
    $region8: #{tpu_custom_call.1} parent=1 // pred_region
      _
    $region9: #{tpu_custom_call.1} parent=1 // pred_fallthru
      _
    // Predicated region
    $region10: #{tpu_custom_call.1} parent=1 // pred_check
      _
    $region11: #{tpu_custom_call.1} parent=1 // pred_check_branch
      %31 = sbr.rel (0) target = $region13
    $region12: #{tpu_custom_call.1} parent=1 // pred_region
      _
    $region13: #{tpu_custom_call.1} parent=1 // pred_fallthru
      _
    // Predicated region
    $region14: #{tpu_custom_call.1} parent=1 // pred_check
      _
    $region15: #{tpu_custom_call.1} parent=1 // pred_check_branch
      %33 = sbr.rel (0) target = $region17
    $region16: #{tpu_custom_call.1} parent=1 // pred_region
      _
    $region17: #{tpu_custom_call.1} parent=1 // pred_fallthru
      _
    // Predicated region
    $region18: #{tpu_custom_call.1} parent=1 // pred_check
      _
    $region19: #{tpu_custom_call.1} parent=1 // pred_check_branch
      %35 = sbr.rel (0) target = $region21
    $region20: #{tpu_custom_call.1} parent=1 // pred_region
      _
    $region21: #{tpu_custom_call.1} parent=1 // pred_fallthru
      _
    // Predicated region
    $region22: #{tpu_custom_call.1} parent=1 // pred_check
      _
    $region23: #{tpu_custom_call.1} parent=1 // pred_check_branch
      %37 = sbr.rel (0) target = $region25
    $region24: #{tpu_custom_call.1} parent=1 // pred_region
      %38 = dma.done [#allocation3], 256
    $region25: #{tpu_custom_call.1} parent=1 // pred_fallthru
      _
    %v39 = vld [vmem:[#allocation2] sm:$0xff]
    %v40 = vld [vmem:[#allocation2 + $0x8] sm:$0xff]
    %v41 = vadd.f32 %v39, %v40
    %v42 = vrot.slane %v41, 4
    %v43 = vadd.f32 %v41, %v42
    %v44 = vrot.slane %v43, 2
    %v45 = vadd.f32 %v43, %v44
    %v46 = vrot.slane %v45, 1
    %v47 = vadd.f32 %v45, %v46
    %v48 = vmul.f32 %v47, 0.0625
    %v49 = vsub.f32 %v39, %v48
    %v50 = vsub.f32 %v40, %v48
    %v51 = vmul.f32 %v49, %v49
    %v52 = vmul.f32 %v50, %v50
    %v53 = vadd.f32 %v51, %v52
    %v54 = vrot.slane %v53, 4
    %v55 = vadd.f32 %v53, %v54
    %v56 = vrot.slane %v55, 2
    %v57 = vadd.f32 %v55, %v56
    %v58 = vrot.slane %v57, 1
    %v59 = vadd.f32 %v57, %v58
    %v60 = vmul.f32 %v59, 0.06666667
    %v61 = vadd.f32 %v60, 1e-05
    %v62 = vrsqrt.pop %v61
    %v63 = vmul.f32 %v61, %v62
    %vm64 = vcmp.eq.f32.partialorder %v61, inf
    %v65 = vsel %vm64, %v61, %v63
    %vm66 = vcmp.eq.f32.partialorder %v61, 0.0
    %v67 = vand.u32 %v61, 2147483648
    %v68 = vsel %vm66, %v67, %v65
    %v69 = vand.u32 2147483647, %v49
    %v70 = vand.u32 2147483647, %v50
    %vm71 = vcmp.lt.f32.partialorder %v69, %v68
    %vm72 = vcmp.lt.f32.partialorder %v70, %v68
    %v73 = vsel %vm71, %v49, 0.0
    %v74 = vsel %vm72, %v50, 0.0
    %v75 = vsel %vm71, 1, 0
    %v76 = vsel %vm72, 1, 0
    %v77 = vcvt.s32.f32 %v75
    %v78 = vcvt.s32.f32 %v76
    %v79 = vadd.f32 %v77, %v78
    %v80 = vrot.slane %v79, 4
    %v81 = vadd.f32 %v79, %v80
    %v82 = vrot.slane %v81, 2
    %v83 = vadd.f32 %v81, %v82
    %v84 = vrot.slane %v83, 1
    %v85 = vadd.f32 %v83, %v84
    %v86 = vadd.f32 %v73, %v74
    %v87 = vrot.slane %v86, 4
    %v88 = vadd.f32 %v86, %v87
    %v89 = vrot.slane %v88, 2
    %v90 = vadd.f32 %v88, %v89
    %v91 = vrot.slane %v90, 1
    %v92 = vadd.f32 %v90, %v91
    %v93 = vmul.f32 %v73, %v73
    %v94 = vmul.f32 %v74, %v74
    %v95 = vadd.f32 %v93, %v94
    %v96 = vrot.slane %v95, 4
    %v97 = vadd.f32 %v95, %v96
    %v98 = vrot.slane %v97, 2
    %v99 = vadd.f32 %v97, %v98
    %v100 = vrot.slane %v99, 1
    %v101 = vadd.f32 %v99, %v100
    %v102 = vrcp.pop %v85
    %v103 = vmul.f32 %v92, %v102
    %v104 = vadd.f32 %v48, %v103
    %v105 = vmul.f32 %v92, %v92
    %v106 = vmul.f32 %v105, %v102
    %v107 = vsub.f32 %v101, %v106
    %v108 = vsub.f32 %v85, 1.0
    %v109 = vrcp.pop %v108
    %v110 = vmul.f32 %v107, %v109
    %v111 = vadd.f32 %v110, 1e-05
    %v112 = vrsqrt.pop %v111
    %v113 = vld [vmem:[%s1] sm:$0x1]
    %v114 = vmul.f32 %v113, %v112
    %v115 = vld [vmem:[%s2] sm:$0x1]
    %v116 = vmul.f32 %v104, %v114
    %v117 = vsub.f32 %v115, %v116
    %v119 = vlaneseq
    %v120 = vshrl.u32 %v119, 7
    %v121 = vsub.s32 0, %v120
    %v122 = vrot.slane %v114, %v121
    %v124 = vmul.f32 %v39, %v122
    %v125 = vmul.f32 %v40, %v122
    %v127 = vlaneseq
    %v128 = vshrl.u32 %v127, 7
    %v129 = vsub.s32 0, %v128
    %v130 = vrot.slane %v117, %v129
    %v132 = vadd.f32 %v124, %v130
    %v133 = vadd.f32 %v125, %v130
    %134 = vst [vmem:[#allocation5] sm:$0xff] %v132
    %135 = vst [vmem:[#allocation5 + $0x8] sm:$0xff] %v133
    %v136 = vld [vmem:[%s3] sm:$0x1]
    %v137 = vmul.f32 %v136, 0.9
    %v138 = vmul.f32 %v104, 0.1
    %v139 = vadd.f32 %v137, %v138
    %140 = vst [vmem:[#allocation6] sm:$0x1] %v139
    %v141 = vld [vmem:[%s4] sm:$0x1]
    %v142 = vmul.f32 %v141, 0.9
    %v143 = vmul.f32 %v110, 0.1
    %v144 = vadd.f32 %v142, %v143
    %145 = vst [vmem:[#allocation8] sm:$0x1] %v144
    // Predicated region
    $region26: #{tpu_custom_call.1} parent=1 // pred_check
      _
    $region27: #{tpu_custom_call.1} parent=1 // pred_check_branch
      %147 = sbr.rel (0) target = $region29
    $region28: #{tpu_custom_call.1} parent=1 // pred_region
      %s149 = ssub.s32 256, 256
      %150 = vsyncadd [#allocation4], %s149
      %s151 = sshll.u32 [#allocation5], 4
      %s152 = int_to_ptr.vmem [resolvable:$true] %s151
      %157 = dma.vmem_to_hbm [thread:$0]  %s152, 256, %s5, [#allocation4], 128, 128, 8
    $region29: #{tpu_custom_call.1} parent=1 // pred_fallthru
      _
    // Predicated region
    $region30: #{tpu_custom_call.1} parent=1 // pred_check
      _
    $region31: #{tpu_custom_call.1} parent=1 // pred_check_branch
      %159 = sbr.rel (0) target = $region33
    $region32: #{tpu_custom_call.1} parent=1 // pred_region
      %s161 = ssub.s32 16, 16
      %162 = vsyncadd [#allocation7], %s161
      %s164 = sshll.u32 [#allocation6], 4
      %s165 = int_to_ptr.vmem [resolvable:$true] %s164
      %167 = dma.vmem_to_hbm [thread:$0]  %s165, 16, %s6, [#allocation7]
    $region33: #{tpu_custom_call.1} parent=1 // pred_fallthru
      _
    // Predicated region
    $region34: #{tpu_custom_call.1} parent=1 // pred_check
      _
    $region35: #{tpu_custom_call.1} parent=1 // pred_check_branch
      %169 = sbr.rel (0) target = $region37
    $region36: #{tpu_custom_call.1} parent=1 // pred_region
      %s171 = ssub.s32 16, 16
      %172 = vsyncadd [#allocation7], %s171
      %s174 = sshll.u32 [#allocation8], 4
      %s175 = int_to_ptr.vmem [resolvable:$true] %s174
      %177 = dma.vmem_to_hbm [thread:$0]  %s175, 16, %s7, [#allocation7]
    $region37: #{tpu_custom_call.1} parent=1 // pred_fallthru
      _
    // Predicated region
    $region38: #{tpu_custom_call.1} parent=1 // pred_check
      _
    $region39: #{tpu_custom_call.1} parent=1 // pred_check_branch
      %179 = sbr.rel (0) target = $region41
    $region40: #{tpu_custom_call.1} parent=1 // pred_region
      %180 = dma.done [#allocation4], 256
    $region41: #{tpu_custom_call.1} parent=1 // pred_fallthru
      _
    // Predicated region
    $region42: #{tpu_custom_call.1} parent=1 // pred_check
      _
    $region43: #{tpu_custom_call.1} parent=1 // pred_check_branch
      %182 = sbr.rel (0) target = $region45
    $region44: #{tpu_custom_call.1} parent=1 // pred_region
      %183 = dma.done [#allocation7], 16
    $region45: #{tpu_custom_call.1} parent=1 // pred_fallthru
      _
    // Predicated region
    $region46: #{tpu_custom_call.1} parent=1 // pred_check
      _
    $region47: #{tpu_custom_call.1} parent=1 // pred_check_branch
      %185 = sbr.rel (0) target = $region49
    $region48: #{tpu_custom_call.1} parent=1 // pred_region
      %186 = dma.done [#allocation7], 16
    $region49: #{tpu_custom_call.1} parent=1 // pred_fallthru
      _
    %187 = vsyncpa [#allocation3], 1
    %188 = vsyncpa [#allocation4], 1
    %189 = vsyncpa [#allocation7], 1

</llo_original>
